<compile_context>
chip_gen: v7x
topology: tpu7x:2x2x1
jax: 0.10.0
libtpu: 0.0.40
codegen_flags: <defaults>
</compile_context>

<pallas_src>
import functools

import jax
import jax.numpy as jnp
from jax.experimental import pallas as pl
from jax.experimental.pallas import tpu as pltpu


def _similarity_kernel(v_ref, t_ref, o_ref, acc_ref, *,
                       normalize, nb, n_total, mask_n):
    # grid = (par0, par1, n_blocks); the n reduction axis is last ("arbitrary").
    n_idx = pl.program_id(2)

    @pl.when(n_idx == 0)
    def _():
        acc_ref[...] = jnp.zeros_like(acc_ref)

    v = v_ref[...].astype(jnp.float32)                 # (nb, tt, d)

    if mask_n:
        # Ragged n tail: zero padded rows BEFORE normalization so garbage in
        # the block padding (possibly inf/NaN) cannot leak into the n-sum.
        row = jax.lax.broadcasted_iota(jnp.int32, (nb, 1, 1), 0)
        v = jnp.where(row + n_idx * nb < n_total, v, 0.0)

    if normalize:
        # torch.nn.functional.normalize: x / max(||x||_2, 1e-12)
        #   == x * rsqrt(max(sum(x^2), 1e-24))        (rsqrt -> EUP slot)
        sumsq = jnp.sum(v * v, axis=-1, keepdims=True)
        v = v * jax.lax.rsqrt(jnp.maximum(sumsq, 1e-24))

    # Fold the nb sub-reduction on the VPU, then ONE MXU matmul per grid step
    # into the small (tt, c) f32 accumulator.  1/(n*tau) is pre-folded into t.
    vsum = jnp.sum(v, axis=0) if nb > 1 else v[0]      # (tt, d)
    acc_ref[...] += jnp.dot(vsum, t_ref[...],
                            preferred_element_type=jnp.float32)

    @pl.when(n_idx == pl.num_programs(2) - 1)
    def _():
        o_ref[...] = acc_ref[...].astype(o_ref.dtype)


def similarity(v_feat, t_feat, split, sig_T_train=0.2, sig_T_infer=0.07, *,
               nb=None):
    """dist (b, c, t).  Pass v_feat in bf16 to halve streamed HBM bytes.

    `nb` (n-axis block) is auto-derived from a VMEM budget; it is exposed
    mainly for testing / tuning.
    """
    b, n, t, d = v_feat.shape
    c = t_feat.shape[0]
    normalize = (split == "test")
    tau = sig_T_infer if normalize else sig_T_train

    # Hoist all t_feat prep out of the kernel: normalize once (test path),
    # fold the 1/(n*tau) scale in, and pre-transpose to (d, c).
    tf = t_feat.astype(jnp.float32)
    if normalize:
        tf = tf * jax.lax.rsqrt(
            jnp.maximum(jnp.sum(tf * tf, axis=-1, keepdims=True), 1e-24))
    t_dc = (tf * (1.0 / (n * tau))).T                    # (d, c), tiny

    in_item = jnp.dtype(v_feat.dtype).itemsize

    # --- Tile selection ------------------------------------------------------
    # Time tile: full when t <= 512, else 512 (measured HBM-roofline sweet
    # spot); shrink only if a single (tt, d) slab would blow the buffer budget.
    per_buf_budget = 16 * 1024 * 1024                    # one input buffer
    tt = t if t <= 512 else 512
    while t > tt and tt > 128 and tt * d * in_item > per_buf_budget:
        tt //= 2
    n_tt = pl.cdiv(t, tt)

    # n-axis block: as many (tt, d) crops per DMA as fit one 16 MiB buffer.
    # Double-buffered -> <= 32 MiB of input VMEM, safe under the 48 MiB scoped
    # limit we request (and under v7x's 64 MiB physical VMEM).
    if nb is None:
        nb = max(1, min(n, per_buf_budget // max(1, tt * d * in_item)))
    else:
        nb = max(1, min(n, int(nb)))
    nnb = pl.cdiv(n, nb)
    mask_n = (n % nb) != 0

    kernel = functools.partial(_similarity_kernel, normalize=normalize,
                               nb=nb, n_total=n, mask_n=mask_n)

    # --- Grid ordering: larger parallel axis first (v7x megacore balance) ----
    if n_tt >= b:
        grid = (n_tt, b, nnb)
        v_map = lambda it, ib, i_n: (ib, i_n, it, 0)
        t_map = lambda it, ib, i_n: (0, 0)
        o_map = lambda it, ib, i_n: (ib, it, 0)
    else:
        grid = (b, n_tt, nnb)
        v_map = lambda ib, it, i_n: (ib, i_n, it, 0)
        t_map = lambda ib, it, i_n: (0, 0)
        o_map = lambda ib, it, i_n: (ib, it, 0)

    out_tc = pl.pallas_call(
        kernel,
        out_shape=jax.ShapeDtypeStruct((b, t, c), jnp.float32),
        grid_spec=pltpu.PrefetchScalarGridSpec(
            num_scalar_prefetch=0,
            grid=grid,                                   # reduction axis last
            in_specs=[
                # (nb, tt, d) crop per grid step, streamed in native dtype.
                # TODO(synk): sweep pipeline_mode=pl.Buffered(3) here if a
                # bundle/xprof dump still shows exposed DMA in the train path.
                pl.BlockSpec((None, nb, tt, d), v_map),
                # pre-normalized, pre-scaled, pre-transposed text features.
                pl.BlockSpec((d, c), t_map),
            ],
            out_specs=pl.BlockSpec((None, tt, c), o_map),
            scratch_shapes=[pltpu.VMEM((tt, c), jnp.float32)],
        ),
        compiler_params=pltpu.CompilerParams(
            dimension_semantics=("parallel", "parallel", "arbitrary"),
            vmem_limit_bytes=48 * 1024 * 1024),          # fits v7x's 64 MiB
    )(v_feat, t_dc)

    # (b, t, c) -> (b, c, t); negligible traffic vs. the streamed v_feat.
    return jnp.transpose(out_tc, (0, 2, 1))


def _reference(v_feat, t_feat, split, sig_T_train=0.2, sig_T_infer=0.07):
    """Pure-JAX transcription of the PyTorch forward, for validation."""
    b, n, t, d = v_feat.shape
    tf = jnp.broadcast_to(t_feat[None, None], (b, n) + t_feat.shape)
    if split == "test":
        tau = sig_T_infer
        v_feat = v_feat / jnp.maximum(
            jnp.linalg.norm(v_feat, axis=-1, keepdims=True), 1e-12)
        tf = tf / jnp.maximum(jnp.linalg.norm(tf, axis=-1, keepdims=True), 1e-12)
    else:
        tau = sig_T_train
    dist = jnp.einsum("bntd,bmcd->bctnm", v_feat, tf) / tau
    return dist.mean(-1).mean(-1)


if __name__ == "__main__":
    key = jax.random.PRNGKey(0)
    k1, k2, k3, k4 = jax.random.split(key, 4)

    # Small shapes consistent with (b, n, t, d) / (c, d).
    b, n, t, d, c = 2, 4, 16, 32, 8
    v_feat = jax.random.normal(k1, (b, n, t, d), dtype=jnp.float32)
    t_feat = jax.random.normal(k2, (c, d), dtype=jnp.float32)

    for split in ("train", "test"):
        out = similarity(v_feat, t_feat, split)
        jax.block_until_ready(out)
        ref = _reference(v_feat, t_feat, split)
        assert out.shape == (b, c, t), out.shape
        assert jnp.allclose(out, ref, rtol=1e-4, atol=1e-4), f"mismatch for {split}"

    # Ragged n-block path (nb=3 does not divide n=4 -> in-kernel n masking).
    out_m = similarity(v_feat, t_feat, "test", nb=3)
    jax.block_until_ready(out_m)
    ref_m = _reference(v_feat, t_feat, "test")
    assert jnp.allclose(out_m, ref_m, rtol=1e-4, atol=1e-4), "mismatch for masked nb"

    # Tiled time axis with a ragged tail (t=640 -> tt=512, last t-tile padded),
    # streamed in bf16 (the intended production input dtype on v5e/v6e).
    b2, n2, t2, d2, c2 = 1, 3, 640, 128, 8
    v_feat2 = jax.random.normal(k3, (b2, n2, t2, d2), dtype=jnp.float32
                                ).astype(jnp.bfloat16)
    t_feat2 = jax.random.normal(k4, (c2, d2), dtype=jnp.float32)
    out2 = similarity(v_feat2, t_feat2, "test")
    jax.block_until_ready(out2)
    ref2 = _reference(v_feat2.astype(jnp.float32), t_feat2, "test")
    assert out2.shape == (b2, c2, t2), out2.shape
    assert jnp.allclose(out2, ref2, rtol=1e-3, atol=1e-3), "mismatch for tiled bf16 test"

    print("KERNEL_OK")
</pallas_src>

<mosaic_0001>
module attributes {stable_mosaic.version = 11 : i64} {
  func.func @_similarity_kernel(%arg0: i32, %arg1: i32, %arg2: i32, %arg3: memref<1x4x16x32xf32, #tpu.memory_space<vmem>>, %arg4: memref<32x8xf32, #tpu.memory_space<vmem>>, %arg5: memref<1x16x8xf32, #tpu.memory_space<vmem>>, %arg6: memref<16x8xf32, #tpu.memory_space<vmem>>) attributes {dimension_semantics = [#tpu.dimension_semantics<parallel>, #tpu.dimension_semantics<parallel>, #tpu.dimension_semantics<arbitrary>], iteration_bounds = array<i64: 2, 1, 1>, scalar_prefetch = 0 : i64, scratch_operands = 1 : i64, tpu.core_type = #tpu.core_type<tc>, window_params = [{transform_indices = @transform_0, window_bounds = array<i64: 1, 4, 16, 32>}, {pipeline_mode = #tpu.pipeline_mode<synchronous>, transform_indices = @transform_1, window_bounds = array<i64: 32, 8>}, {transform_indices = @transform_2, window_bounds = array<i64: 1, 16, 8>}]} {
    %c0_i32 = arith.constant 0 : i32
    %0 = arith.cmpi eq, %arg2, %c0_i32 : i32
    %1 = arith.extui %0 : i1 to i32
    %c0_i32_0 = arith.constant 0 : i32
    %2 = arith.cmpi ne, %1, %c0_i32_0 : i32
    scf.if %2 {
      %cst_13 = arith.constant 0.000000e+00 : f32
      %14 = vector.broadcast %cst_13 : f32 to vector<16x8xf32>
      %c0_14 = arith.constant 0 : index
      %c0_15 = arith.constant 0 : index
      %15 = vector.load %arg6[%c0_14, %c0_15] : memref<16x8xf32, #tpu.memory_space<vmem>>, vector<16x8xf32>
      tpu.vector_store %arg6[%c0_14, %c0_15], %14 {strides = array<i32>} : memref<16x8xf32, #tpu.memory_space<vmem>>, vector<16x8xf32>,
    } else {
    }
    %c0 = arith.constant 0 : index
    %c0_1 = arith.constant 0 : index
    %c0_2 = arith.constant 0 : index
    %c0_3 = arith.constant 0 : index
    %3 = vector.load %arg3[%c0, %c0_1, %c0_2, %c0_3] : memref<1x4x16x32xf32, #tpu.memory_space<vmem>>, vector<1x4x16x32xf32>
    %4 = vector.shape_cast %3 : vector<1x4x16x32xf32> to vector<4x16x32xf32>
    %cst = arith.constant dense<0.000000e+00> : vector<16x32xf32>
    %5 = vector.multi_reduction <add>, %4, %cst [0] : vector<4x16x32xf32> to vector<16x32xf32>
    %c0_4 = arith.constant 0 : index
    %c0_5 = arith.constant 0 : index
    %6 = vector.load %arg6[%c0_4, %c0_5] : memref<16x8xf32, #tpu.memory_space<vmem>>, vector<16x8xf32>
    %c0_6 = arith.constant 0 : index
    %c0_7 = arith.constant 0 : index
    %7 = vector.load %arg4[%c0_6, %c0_7] : memref<32x8xf32, #tpu.memory_space<vmem>>, vector<32x8xf32>
    %cst_8 = arith.constant dense<0.000000e+00> : vector<16x8xf32>
    %8 = tpu.matmul %5, %7, %cst_8 {dimension_numbers = #tpu.dot_dimension_numbers<[1], [0], [0], [1], [0, 0, 1, 1], [], []>} : vector<16x32xf32>, vector<32x8xf32>, vector<16x8xf32> -> vector<16x8xf32>
    %9 = arith.addf %6, %8 : vector<16x8xf32>
    %c0_9 = arith.constant 0 : index
    %c0_10 = arith.constant 0 : index
    %10 = vector.load %arg6[%c0_9, %c0_10] : memref<16x8xf32, #tpu.memory_space<vmem>>, vector<16x8xf32>
    tpu.vector_store %arg6[%c0_9, %c0_10], %9 {strides = array<i32>} : memref<16x8xf32, #tpu.memory_space<vmem>>, vector<16x8xf32>,
    %c0_i32_11 = arith.constant 0 : i32
    %11 = arith.cmpi eq, %arg2, %c0_i32_11 : i32
    %12 = arith.extui %11 : i1 to i32
    %c0_i32_12 = arith.constant 0 : i32
    %13 = arith.cmpi ne, %12, %c0_i32_12 : i32
    scf.if %13 {
      %c0_13 = arith.constant 0 : index
      %c0_14 = arith.constant 0 : index
      %14 = vector.load %arg6[%c0_13, %c0_14] : memref<16x8xf32, #tpu.memory_space<vmem>>, vector<16x8xf32>
      %c0_15 = arith.constant 0 : index
      %c0_16 = arith.constant 0 : index
      %c0_17 = arith.constant 0 : index
      %15 = vector.load %arg5[%c0_15, %c0_16, %c0_17] : memref<1x16x8xf32, #tpu.memory_space<vmem>>, vector<1x16x8xf32>
      %16 = vector.shape_cast %15 : vector<1x16x8xf32> to vector<16x8xf32>
      %17 = vector.shape_cast %14 : vector<16x8xf32> to vector<1x16x8xf32>
      tpu.vector_store %arg5[%c0_15, %c0_16, %c0_17], %17 {strides = array<i32>} : memref<1x16x8xf32, #tpu.memory_space<vmem>>, vector<1x16x8xf32>,
    } else {
    }
    return
  }
  func.func @transform_0(%arg0: i32, %arg1: i32, %arg2: i32) -> (i32, i32, i32, i32) {
    %c0_i32 = arith.constant 0 : i32
    %c0_i32_0 = arith.constant 0 : i32
    return %arg0, %arg2, %arg1, %c0_i32 : i32, i32, i32, i32
  }
  func.func @transform_1(%arg0: i32, %arg1: i32, %arg2: i32) -> (i32, i32) {
    %c0_i32 = arith.constant 0 : i32
    %c0_i32_0 = arith.constant 0 : i32
    %c0_i32_1 = arith.constant 0 : i32
    return %c0_i32, %c0_i32_0 : i32, i32
  }
  func.func @transform_2(%arg0: i32, %arg1: i32, %arg2: i32) -> (i32, i32, i32) {
    %c0_i32 = arith.constant 0 : i32
    %c0_i32_0 = arith.constant 0 : i32
    return %arg0, %arg1, %c0_i32 : i32, i32, i32
  }
}

</mosaic_0001>

<llo_original>
// kernel: tpu_custom_call.1
$region0: #{tpu_custom_call.1}
  #allocation0 [shape = 'u32[]', space=smem, size = 0x4, offset = 0x4, fixed_abs, tag = 'smem constant byte address 0x4 - core index']
  #allocation1 [shape = 'u32[144,128]{1,0:T(1,128)}', space=vmem, size = 0x12000, scoped, tag = 'internal scratch']
  #allocation2 [shape = 'f32[16,8]{1,0:T(8,128)}', space=vmem, size = 0x2000, scoped, tag = 'scratch operand']
  %s0 = inlined_call_operand.hbm [shape: f32[2,4,16,32], index: 0, kind: input, shape index: {}]
  %s1 = inlined_call_operand.vmem [shape: f32[32,8], index: 1, kind: input, shape index: {}]
  %s2 = inlined_call_operand.vmem [shape: f32[2,16,8], index: 2, kind: output, shape index: {}]
  %s3 = sld [smem:[#allocation0]]
  $region53: #{tpu_custom_call.1} parent=0
    _
  %s5 = ssub.s32 1, %s3
  %s6 = scalar_select 0, %s5, %s3
  $region1: #{tpu_custom_call.1} parent=0
    #allocation3 [shape = 'u8[65536]{0}', space=vmem, size = 0x10000, scoped, tag = 'input window, operand 0']
    #allocation4 [shape = 's32[2]{0}', space=sflag, size = 0x8, scoped, tag = 'scoped memory for tpu_custom_call.1']
    %7 = vsyncpa [#allocation4], 0
    %s8 = scalar_lea.sflag [#allocation4], 1
    %9 = vsyncpa %s8, 0
    loop: start=0, step=1, limit=4
    $region2: #{tpu_custom_call.1} parent=1 // loop_pre_header
      _
    $region3: #{tpu_custom_call.1} parent=1 // loop_header
      %s11 = sphi 0, %s15
      %p12 = scmp.ge.s32.totalorder %s11, 4
      %s18 = sphi 0, %s37
      %s19 = sphi 0, %s33
      %s20 = sphi 0, %s29
      %s21 = sphi 0, %s18
      %s22 = sphi 0, %s19
      %s23 = sphi 0, %s20
      %s24 = sphi 0, %s21
      %s25 = sphi 0, %s22
      %s26 = sphi 0, %s23
      %s44 = sphi 0, %s46
      %s47 = sphi 0, %s44
      %s48 = sphi 0, %s47
      %s64 = sphi 0, %s48
      %s68 = sphi 0, %s68
      %s70 = sphi 0, %s68
      %s71 = sphi 0, %s70
      %s85 = sphi 0, %s71
      %s93 = sphi 0, %s95
      %s96 = sphi 0, %s93
      %s97 = sphi 0, %s96
      %s113 = sphi 0, %s97
    $region4: #{tpu_custom_call.1} parent=1 // loop_header_branch
      %14 = sbr.rel (%p12) target = $region8
    $region5: #{tpu_custom_call.1} parent=1 // loop_body
      %s16 = ssub.s32 %s11, 1
      %s17 = ssub.s32 %s11, 2
      %s27 = sadd.s32 1, %s20
      %p28 = scmp.ge.s32.totalorder %s27, 1
      %s29 = scalar_select %p28, 0, %s27
      %s30 = sadd.s32 1, %s19
      %s31 = scalar_select %p28, %s30, %s19
      %p32 = scmp.ge.s32.totalorder %s31, 1
      %s33 = scalar_select %p32, 0, %s31
      %s34 = sadd.s32 1, %s18
      %s35 = scalar_select %p32, %s34, %s18
      %p36 = scmp.ge.s32.totalorder %s35, 2
      %s37 = scalar_select %p36, 0, %s35
      %s38 = ssub.s32 %s18, %s37
      %s39 = ssub.s32 %s20, %s29
      %s40 = sor.u32 %s38, %s39
      %s41 = ssub.s32 %s19, %s33
      %s42 = sor.u32 %s40, %s41
      %p43 = scmp.eq.s32.totalorder %s42, 0
      %s45 = sadd.s32 %s44, 1
      %s46 = scalar_select %p43, %s44, %s45
      %p49 = pneg %p43
      %p50 = scmp.eq.s32.totalorder %s11, 1
      %p51 = por %p49, %p50
      %p52 = scmp.ne.s32.totalorder %s44, %s47
      %p53 = scmp.eq.s32.totalorder %s11, 0
      %p54 = por %p52, %p53
      %p55 = scmp.ne.s32.totalorder %s44, %s47
      %p56 = scmp.eq.s32.totalorder %s16, 1
      %p57 = por %p55, %p56
      %p58 = scmp.ne.s32.totalorder %s47, %s48
      %p59 = scmp.eq.s32.totalorder %s16, 0
      %p60 = por %p58, %p59
      %p61 = scmp.ne.s32.totalorder %s47, %s48
      %p62 = scmp.eq.s32.totalorder %s17, 1
      %p63 = por %p61, %p62
      %p65 = scmp.ne.s32.totalorder %s48, %s64
      %p66 = scmp.eq.s32.totalorder %s17, 0
      %p67 = por %p65, %p66
      %s69 = sadd.s32 %s68, 1
      %p72 = scmp.eq.s32.totalorder %s11, 1
      %p73 = scmp.ne.s32.totalorder %s68, %s70
      %p74 = scmp.eq.s32.totalorder %s11, 0
      %p75 = por %p73, %p74
      %p76 = scmp.ne.s32.totalorder %s68, %s70
      %p77 = scmp.eq.s32.totalorder %s16, 1
      %p78 = por %p76, %p77
      %p79 = scmp.ne.s32.totalorder %s70, %s71
      %p80 = scmp.eq.s32.totalorder %s16, 0
      %p81 = por %p79, %p80
      %p82 = scmp.ne.s32.totalorder %s70, %s71
      %p83 = scmp.eq.s32.totalorder %s17, 1
      %p84 = por %p82, %p83
      %p86 = scmp.ne.s32.totalorder %s71, %s85
      %p87 = scmp.eq.s32.totalorder %s17, 0
      %p88 = por %p86, %p87
      %s89 = ssub.s32 %s18, %s37
      %s90 = ssub.s32 %s19, %s33
      %s91 = sor.u32 %s89, %s90
      %p92 = scmp.eq.s32.totalorder %s91, 0
      %s94 = sadd.s32 %s93, 1
      %s95 = scalar_select %p92, %s93, %s94
      %p98 = pneg %p92
      %p99 = scmp.eq.s32.totalorder %s11, 1
      %p100 = por %p98, %p99
      %p101 = scmp.ne.s32.totalorder %s93, %s96
      %p102 = scmp.eq.s32.totalorder %s11, 0
      %p103 = por %p101, %p102
      %p104 = scmp.ne.s32.totalorder %s93, %s96
      %p105 = scmp.eq.s32.totalorder %s16, 1
      %p106 = por %p104, %p105
      %p107 = scmp.ne.s32.totalorder %s96, %s97
      %p108 = scmp.eq.s32.totalorder %s16, 0
      %p109 = por %p107, %p108
      %p110 = scmp.ne.s32.totalorder %s96, %s97
      %p111 = scmp.eq.s32.totalorder %s17, 1
      %p112 = por %p110, %p111
      %p114 = scmp.ne.s32.totalorder %s97, %s113
      %p115 = scmp.eq.s32.totalorder %s17, 0
      %p116 = por %p114, %p115
      %p117 = scmp.le.s32.totalorder 1, %s11
      %p118 = scmp.lt.s32.totalorder %s11, 3
      %p119 = pnand %p117, %p118
      %p120 = pneg %p119
      // Predicated region
      $region9: #{tpu_custom_call.1} parent=5 // pred_check
        _
      $region10: #{tpu_custom_call.1} parent=5 // pred_check_branch
        %122 = sbr.rel (%p119) target = $region12
      $region11: #{tpu_custom_call.1} parent=5 // pred_region
        %s123 = ssub.s32 %s11, 1
        // Predicated region
        $region13: #{tpu_custom_call.1} parent=11 // pred_check
          %p124 = pneg %p81
        $region14: #{tpu_custom_call.1} parent=11 // pred_check_branch
          %126 = sbr.rel (%p124) target = $region16
        $region15: #{tpu_custom_call.1} parent=11 // pred_region
          _
        $region16: #{tpu_custom_call.1} parent=11 // pred_fallthru
          _
      $region12: #{tpu_custom_call.1} parent=5 // pred_fallthru
        _
      %p127 = scmp.lt.s32.totalorder %s11, 2
      // Predicated region
      $region17: #{tpu_custom_call.1} parent=5 // pred_check
        %p128 = pneg %p127
      $region18: #{tpu_custom_call.1} parent=5 // pred_check_branch
        %130 = sbr.rel (%p128) target = $region20
      $region19: #{tpu_custom_call.1} parent=5 // pred_region
        // Predicated region
        $region21: #{tpu_custom_call.1} parent=19 // pred_check
          %p131 = pneg %p54
        $region22: #{tpu_custom_call.1} parent=19 // pred_check_branch
          %133 = sbr.rel (%p131) target = $region24
        $region23: #{tpu_custom_call.1} parent=19 // pred_region
          %s134 = sand.u32 %s44, 1
          %s135 = scalar_lea.sflag [#allocation4], %s134
          %s136 = sand.u32 %s44, 1
          %s137 = smul.addr %s136, 64
          %s138 = scalar_lea.vmem [#allocation3], %s137
          %s139 = smul.u32 4, %s20
          %s140 = smul.u32 2, %s19
          %s142 = ssub.s32 1024, 1024
          %143 = vsyncadd %s135, %s142
          %s144 = smul.addr %s139, 2
          %s145 = sadd.s32 %s140, %s144
          %s146 = smul.addr %s18, 8
          %s147 = sadd.s32 %s145, %s146
          %s148 = smul.addr %s147, 128
          %s149 = scalar_lea.hbm %s0, %s148
          %s150 = sshll.u32 %s138, 4
          %s151 = int_to_ptr.vmem [resolvable:$true] %s150
          %156 = dma.hbm_to_vmem [thread:$0]  %s149, 1024, %s151, %s135, 128, 128, 8
        $region24: #{tpu_custom_call.1} parent=19 // pred_fallthru
          _
      $region20: #{tpu_custom_call.1} parent=5 // pred_fallthru
        _
      %p157 = scmp.le.s32.totalorder 1, %s11
      %p158 = scmp.lt.s32.totalorder %s11, 3
      %p159 = pnand %p157, %p158
      %p160 = pneg %p159
      // Predicated region
      $region25: #{tpu_custom_call.1} parent=5 // pred_check
        _
      $region26: #{tpu_custom_call.1} parent=5 // pred_check_branch
        %162 = sbr.rel (%p159) target = $region28
      $region27: #{tpu_custom_call.1} parent=5 // pred_region
        %s163 = ssub.s32 %s11, 1
        %s164 = sand.u32 %s47, 1
        %s165 = scalar_lea.sflag [#allocation4], %s164
        %s166 = sand.u32 %s47, 1
        %s167 = smul.addr %s166, 64
        %s168 = scalar_lea.vmem [#allocation3], %s167
        // Predicated region
        $region29: #{tpu_custom_call.1} parent=27 // pred_check
          %p169 = pneg %p60
        $region30: #{tpu_custom_call.1} parent=27 // pred_check_branch
          %171 = sbr.rel (%p169) target = $region32
        $region31: #{tpu_custom_call.1} parent=27 // pred_region
          %172 = dma.done %s165, 1024
        $region32: #{tpu_custom_call.1} parent=27 // pred_fallthru
          _
        %s173 = sand.u32 %s47, 1
        %s174 = scalar_lea.sflag [#allocation4], %s173
        %s175 = sand.u32 %s47, 1
        %s176 = smul.addr %s175, 64
        %s177 = scalar_lea.vmem [#allocation3], %s176
        %p178 = pneg %p60
        %p179 = pneg %p57
        %p180 = pneg %p81
        %p181 = pneg %p78
        %p182 = pneg %p109
        %p183 = pneg %p106
        %s184 = smul.u32 2, %s22
        %p185 = scmp.lt.s32.totalorder %s21, 1
        %s186 = scalar_select %p185, %s21, 1
        %p187 = scmp.lt.s32.totalorder %s184, 1
        %s188 = scalar_select %p187, %s184, 1
        %s189 = smul.addr %s186, 2
        %s190 = sadd.s32 %s188, %s189
        %s191 = smul.addr %s190, 8
        %s192 = scalar_lea.vmem %s2, %s191
        %s193 = smul.u32 4, %s23
        %s194 = smul.u32 2, %s22
        %s195 = smul.u32 2, %s22
        %p196 = scmp.lt.s32.totalorder %s21, 1
        %s197 = scalar_select %p196, %s21, 1
        %p198 = scmp.lt.s32.totalorder %s195, 1
        %s199 = scalar_select %p198, %s195, 1
        %s200 = smul.addr %s197, 2
        %s201 = sadd.s32 %s199, %s200
        %s202 = smul.addr %s201, 8
        %s203 = scalar_lea.vmem %s2, %s202
        %s204 = smul.u32 2, %s22
        %p205 = scmp.eq.s32.totalorder %s23, 0
        // Predicated region
        $region33: #{tpu_custom_call.1} parent=27 // pred_check
          %p206 = pneg %p205
        $region34: #{tpu_custom_call.1} parent=27 // pred_check_branch
          %208 = sbr.rel (%p206) target = $region36
        $region35: #{tpu_custom_call.1} parent=27 // pred_region
          %vm209 = vcmask 64512
          %210 = vst.msk [vmem:[#allocation2] sm:$0xff] %vm209, 0.0
          %211 = vst.msk [vmem:[#allocation2 + $0x8] sm:$0xff] %vm209, 0.0
        $region36: #{tpu_custom_call.1} parent=27 // pred_fallthru
          _
        %v212 = vld [vmem:[%s168] sm:$0xff]
        %v213 = vld [vmem:[%s168 + $0x8] sm:$0xff]
        %v214 = vld [vmem:[%s168 + $0x10] sm:$0xff]
        %v215 = vld [vmem:[%s168 + $0x18] sm:$0xff]
        %v216 = vld [vmem:[%s168 + $0x20] sm:$0xff]
        %v217 = vld [vmem:[%s168 + $0x28] sm:$0xff]
        %v218 = vld [vmem:[%s168 + $0x30] sm:$0xff]
        %v219 = vld [vmem:[%s168 + $0x38] sm:$0xff]
        %vm220 = vcmask 261120
        %v221 = vsel %vm220, %v212, 0.0
        %v222 = vsel %vm220, %v214, 0.0
        %v223 = vadd.f32 %v221, %v222
        %v224 = vsel %vm220, %v216, 0.0
        %v225 = vadd.f32 %v223, %v224
        %v226 = vsel %vm220, %v218, 0.0
        %v227 = vadd.f32 %v225, %v226
        %v228 = vsel %vm220, %v213, 0.0
        %v229 = vsel %vm220, %v215, 0.0
        %v230 = vadd.f32 %v228, %v229
        %v231 = vsel %vm220, %v217, 0.0
        %v232 = vadd.f32 %v230, %v231
        %v233 = vsel %vm220, %v219, 0.0
        %v234 = vadd.f32 %v232, %v233
        %v235 = vld [vmem:[#allocation2] sm:$0xff]
        %v236 = vld [vmem:[#allocation2 + $0x8] sm:$0xff]
        %v237 = vld [vmem:[%s1] sm:$0xff]
        %v238 = vld [vmem:[%s1 + $0x8] sm:$0xff]
        %v239 = vld [vmem:[%s1 + $0x10] sm:$0xff]
        %v240 = vld [vmem:[%s1 + $0x18] sm:$0xff]
        %v242 = vsel %vm220, %v227, 0
        %v245 = vsel %vm220, %v234, 0
        %247 = vmatprep.subr.mxu0 0.0
        %248 = vmatpush1.msra.mxu0 %v237
        %249 = vmatprep.subr.mxu0 0.0
        %250 = vmatpush1.msra.mxu0 %v238
        %251 = vmatprep.subr.mxu0 0.0
        %252 = vmatpush1.msra.mxu0 %v239
        %253 = vmatprep.subr.mxu0 0.0
        %254 = vmatpush1.msra.mxu0 %v240
        %255 = vmatprep.subr.mxu0 0.0
        %256 = vmatpush1.msra.mxu0 0.0
        %257 = vmatprep.subr.mxu0 0.0
        %258 = vmatpush1.msra.mxu0 0.0
        %259 = vmatprep.subr.mxu0 0.0
        %260 = vmatpush1.msra.mxu0 0.0
        %261 = vmatprep.subr.mxu0 0.0
        %262 = vmatpush1.msra.mxu0 0.0
        %263 = vmatprep.subr.mxu0 0.0
        %264 = vmatpush1.msra.mxu0 0.0
        %265 = vmatprep.subr.mxu0 0.0
        %266 = vmatpush1.msra.mxu0 0.0
        %267 = vmatprep.subr.mxu0 0.0
        %268 = vmatpush1.msra.mxu0 0.0
        %269 = vmatprep.subr.mxu0 0.0
        %270 = vmatpush1.msra.mxu0 0.0
        %271 = vmatprep.subr.mxu0 0.0
        %272 = vmatpush1.msra.mxu0 0.0
        %273 = vmatprep.subr.mxu0 0.0
        %274 = vmatpush1.msra.mxu0 0.0
        %275 = vmatprep.subr.mxu0 0.0
        %276 = vmatpush1.msra.mxu0 0.0
        %277 = vmatprep.subr.mxu0 0.0
        %278 = vmatpush1.msra.mxu0 0.0
        %279 = vmatprep.subr.mxu0 0.0
        %280 = vmatpush1.msra.mxu0 0.0
        %281 = vmatprep.subr.mxu0 0.0
        %282 = vmatpush1.msra.mxu0 0.0
        %283 = vmatprep.subr.mxu0 0.0
        %284 = vmatpush1.msra.mxu0 0.0
        %285 = vmatprep.subr.mxu0 0.0
        %286 = vmatpush1.msra.mxu0 0.0
        %287 = vmatprep.subr.mxu0 0.0
        %288 = vmatpush1.msra.mxu0 0.0
        %289 = vmatprep.subr.mxu0 0.0
        %290 = vmatpush1.msra.mxu0 0.0
        %291 = vmatprep.subr.mxu0 0.0
        %292 = vmatpush1.msra.mxu0 0.0
        %293 = vmatprep.subr.mxu0 0.0
        %294 = vmatpush1.msra.mxu0 0.0
        %295 = vmatprep.subr.mxu0 0.0
        %296 = vmatpush1.msra.mxu0 0.0
        %297 = vmatprep.subr.mxu0 0.0
        %298 = vmatpush1.msra.mxu0 0.0
        %299 = vmatprep.subr.mxu0 0.0
        %300 = vmatpush1.msra.mxu0 0.0
        %301 = vmatprep.subr.mxu0 0.0
        %302 = vmatpush1.msra.mxu0 0.0
        %303 = vmatprep.subr.mxu0 0.0
        %304 = vmatpush1.msra.mxu0 0.0
        %305 = vmatprep.subr.mxu0 0.0
        %306 = vmatpush1.msra.mxu0 0.0
        %307 = vmatprep.subr.mxu0 0.0
        %308 = vmatpush1.msra.mxu0 0.0
        %309 = vmatprep.subr.mxu0 0.0
        %310 = vmatpush1.msra.mxu0 0.0
        %311 = vmatprep.mubr.f32.mxu0 0.0
        %312 = vmatmul.mubr.f32.gmra.mrb[0].mxu0 %v242
        %v313 = vpop.f32.mrb[0].mxu0
        %v314 = vadd.f32 0.0, %v313
        %v315 = vpop.f32.mrb[0].mxu0
        %316 = vmatprep.mubr.f32.mxu0 0.0
        %317 = vmatmul.mubr.f32.gmra.mrb[0].mxu0 %v245
        %v318 = vpop.f32.mrb[0].mxu0
        %v319 = vadd.f32 0.0, %v318
        %v320 = vpop.f32.mrb[0].mxu0
        %321 = vdwg.mxu0
        %v322 = vadd.f32 %v235, %v314
        %v323 = vadd.f32 %v236, %v319
        %vm324 = vcmask 64512
        %325 = vst.msk [vmem:[#allocation2] sm:$0xff] %vm324, %v322
        %326 = vst.msk [vmem:[#allocation2 + $0x8] sm:$0xff] %vm324, %v323
        // Predicated region
        $region37: #{tpu_custom_call.1} parent=27 // pred_check
          %p327 = pneg %p205
        $region38: #{tpu_custom_call.1} parent=27 // pred_check_branch
          %329 = sbr.rel (%p327) target = $region40
        $region39: #{tpu_custom_call.1} parent=27 // pred_region
          %v330 = vld [vmem:[#allocation2] sm:$0xff]
          %v331 = vld [vmem:[#allocation2 + $0x8] sm:$0xff]
          %332 = vst.msk [vmem:[%s203] sm:$0xff] %vm324, %v330
          %333 = vst.msk [vmem:[%s203 + $0x8] sm:$0xff] %vm324, %v331
        $region40: #{tpu_custom_call.1} parent=27 // pred_fallthru
          _
        %s334 = smul.u32 2, %s22
        %p335 = scmp.lt.s32.totalorder %s21, 1
        %s336 = scalar_select %p335, %s21, 1
        %p337 = scmp.lt.s32.totalorder %s334, 1
        %s338 = scalar_select %p337, %s334, 1
        %s339 = smul.addr %s336, 2
        %s340 = sadd.s32 %s338, %s339
        %s341 = smul.addr %s340, 8
        %s342 = scalar_lea.vmem %s2, %s341
        // Predicated region
        $region41: #{tpu_custom_call.1} parent=27 // pred_check
          %p343 = pneg %p106
        $region42: #{tpu_custom_call.1} parent=27 // pred_check_branch
          %345 = sbr.rel (%p343) target = $region44
        $region43: #{tpu_custom_call.1} parent=27 // pred_region
          %s346 = smul.u32 2, %s22
        $region44: #{tpu_custom_call.1} parent=27 // pred_fallthru
          _
      $region28: #{tpu_custom_call.1} parent=5 // pred_fallthru
        _
      %p347 = scmp.le.s32.totalorder 2, %s11
      // Predicated region
      $region45: #{tpu_custom_call.1} parent=5 // pred_check
        %p348 = pneg %p347
      $region46: #{tpu_custom_call.1} parent=5 // pred_check_branch
        %350 = sbr.rel (%p348) target = $region48
      $region47: #{tpu_custom_call.1} parent=5 // pred_region
        %s351 = ssub.s32 %s11, 2
        // Predicated region
        $region49: #{tpu_custom_call.1} parent=47 // pred_check
          %p352 = pneg %p112
        $region50: #{tpu_custom_call.1} parent=47 // pred_check_branch
          %354 = sbr.rel (%p352) target = $region52
        $region51: #{tpu_custom_call.1} parent=47 // pred_region
          %s355 = smul.u32 2, %s25
          %p356 = scmp.lt.s32.totalorder %s24, 1
          %s357 = scalar_select %p356, %s24, 1
          %p358 = scmp.lt.s32.totalorder %s355, 1
          %s359 = scalar_select %p358, %s355, 1
          %s360 = smul.addr %s357, 2
          %s361 = sadd.s32 %s359, %s360
          %s362 = smul.addr %s361, 8
          %s363 = scalar_lea.vmem %s2, %s362
        $region52: #{tpu_custom_call.1} parent=47 // pred_fallthru
          _
      $region48: #{tpu_custom_call.1} parent=5 // pred_fallthru
        _
    $region6: #{tpu_custom_call.1} parent=1 // loop_footer
      %s15 = sadd.s32 1, %s11
    $region7: #{tpu_custom_call.1} parent=1 // loop_footer_branch
      %10 = sbr.rel target = $region3
    $region8: #{tpu_custom_call.1} parent=1 // loop_exit
      _
    %364 = vsyncpa [#allocation4], 1
    %s365 = scalar_lea.sflag [#allocation4], 1
    %366 = vsyncpa %s365, 1

</llo_original>
